<compile_context>
chip_gen: v7x
topology: tpu7x:2x2x1
jax: 0.10.0
libtpu: 0.0.40
codegen_flags: <defaults>
</compile_context>

<pallas_src>
import jax
import jax.numpy as jnp
from jax.experimental import pallas as pl
from jax.experimental.pallas import tpu as pltpu


def _bi_classify_kernel(x_ref, w_ref, b_ref, o_ref):
    # x_ref: (B, C, 128) f32 in VMEM   (C = F // 128, sublane/lane dense)
    # w_ref: (1, C, 128) f32 in VMEM   (broadcast along batch)
    # b_ref: (1, 1)      f32 in SMEM   (scalar bias)
    # o_ref: (B, 1)      f32 in VMEM
    prod = x_ref[...] * w_ref[...]                 # VPU, dense vregs
    s = jnp.sum(prod, axis=2)                      # lane reduce   -> (B, C)
    s = jnp.sum(s, axis=1, keepdims=True)          # sublane reduce-> (B, 1)
    o_ref[...] = jax.nn.sigmoid(s + b_ref[0, 0]).astype(o_ref.dtype)


def bi_classify_header_one(x, weight_row, bias):
    """x: (B, F) f32, weight_row: (1, F) f32, bias: (1, 1) f32 -> (B, 1) f32."""
    B, F = x.shape
    assert F % 128 == 0, "feature dim must be a multiple of 128 lanes"
    C = F // 128

    # Lane- and sublane-dense packing: last two dims (C, 128) map to
    # (sublane, lane); C = 48 for seq_len=8, a multiple of 8.
    x3 = x.reshape(B, C, 128)
    w3 = weight_row.reshape(1, C, 128)

    return pl.pallas_call(
        _bi_classify_kernel,
        out_shape=jax.ShapeDtypeStruct((B, 1), jnp.float32),
        grid=(1,),  # single step: whole problem resident in VMEM
        in_specs=[
            pl.BlockSpec((B, C, 128), lambda k: (0, 0, 0)),        # x, full block
            pl.BlockSpec((1, C, 128), lambda k: (0, 0, 0)),        # weight row
            pl.BlockSpec(memory_space=pltpu.MemorySpace.SMEM),     # scalar bias
        ],
        out_specs=pl.BlockSpec((B, 1), lambda k: (0, 0)),
        compiler_params=pltpu.CompilerParams(
            dimension_semantics=("arbitrary",),
        ),
    )(x3, w3, bias)


if __name__ == "__main__":
    # Small shapes consistent with the module: seq_len=8, hidden=768 (fixed).
    seq_len = 8
    hidden = 768
    batch = 2
    features = seq_len * hidden  # 6144

    key = jax.random.PRNGKey(0)
    kx, kw, kb = jax.random.split(key, 3)

    # Deterministic parameter init mimicking nn.Linear: U(-1/sqrt(fan_in), 1/sqrt(fan_in)).
    bound = 1.0 / jnp.sqrt(jnp.float32(features))
    weight_row = jax.random.uniform(
        kw, (1, features), jnp.float32, minval=-bound, maxval=bound
    )
    bias = jax.random.uniform(kb, (1, 1), jnp.float32, minval=-bound, maxval=bound)

    x = jax.random.normal(kx, (batch, features), jnp.float32)

    out = bi_classify_header_one(x, weight_row, bias)
    out = jax.block_until_ready(out)

    # Reference (plain JAX) for correctness.
    ref = jax.nn.sigmoid(x @ weight_row[0][:, None] + bias[0, 0])
    assert out.shape == (batch, 1)
    assert jnp.allclose(out, ref, atol=1e-5, rtol=1e-5), (out, ref)

    print("KERNEL_OK")
</pallas_src>

<mosaic_0001>
module attributes {stable_mosaic.version = 11 : i64} {
  func.func @_bi_classify_kernel(%arg0: i32, %arg1: memref<2x48x128xf32, #tpu.memory_space<vmem>>, %arg2: memref<1x48x128xf32, #tpu.memory_space<vmem>>, %arg3: memref<1x1xf32, #tpu.memory_space<smem>>, %arg4: memref<2x1xf32, #tpu.memory_space<vmem>>) attributes {dimension_semantics = [#tpu.dimension_semantics<arbitrary>], iteration_bounds = array<i64: 1>, scalar_prefetch = 0 : i64, scratch_operands = 0 : i64, tpu.core_type = #tpu.core_type<tc>, window_params = [{pipeline_mode = #tpu.pipeline_mode<synchronous>, transform_indices = @transform_0, window_bounds = array<i64: 2, 48, 128>}, {pipeline_mode = #tpu.pipeline_mode<synchronous>, transform_indices = @transform_1, window_bounds = array<i64: 1, 48, 128>}, {transform_indices = @transform_2, window_bounds = array<i64: 1, 1>}, {pipeline_mode = #tpu.pipeline_mode<synchronous>, transform_indices = @transform_3, window_bounds = array<i64: 2, 1>}]} {
    %c0 = arith.constant 0 : index
    %c0_0 = arith.constant 0 : index
    %c0_1 = arith.constant 0 : index
    %0 = vector.load %arg1[%c0, %c0_0, %c0_1] : memref<2x48x128xf32, #tpu.memory_space<vmem>>, vector<2x48x128xf32>
    %c0_2 = arith.constant 0 : index
    %c0_3 = arith.constant 0 : index
    %c0_4 = arith.constant 0 : index
    %1 = vector.load %arg2[%c0_2, %c0_3, %c0_4] : memref<1x48x128xf32, #tpu.memory_space<vmem>>, vector<1x48x128xf32>
    %2 = vector.broadcast %1 : vector<1x48x128xf32> to vector<2x48x128xf32>
    %3 = arith.mulf %0, %2 : vector<2x48x128xf32>
    %cst = arith.constant dense<0.000000e+00> : vector<2x48xf32>
    %4 = vector.multi_reduction <add>, %3, %cst [2] : vector<2x48x128xf32> to vector<2x48xf32>
    %cst_5 = arith.constant dense<0.000000e+00> : vector<2xf32>
    %5 = vector.multi_reduction <add>, %4, %cst_5 [1] : vector<2x48xf32> to vector<2xf32>
    %6 = vector.shape_cast %5 : vector<2xf32> to vector<2x1xf32>
    %c0_6 = arith.constant 0 : index
    %c0_7 = arith.constant 0 : index
    %7 = memref.load %arg3[%c0_6, %c0_7] : memref<1x1xf32, #tpu.memory_space<smem>>
    %8 = vector.broadcast %7 : f32 to vector<2x1xf32>
    %9 = arith.addf %6, %8 : vector<2x1xf32>
    %10 = arith.negf %9 : vector<2x1xf32>
    %11 = math.exp %10 : vector<2x1xf32>
    %cst_8 = arith.constant 1.000000e+00 : f32
    %12 = vector.broadcast %cst_8 : f32 to vector<2x1xf32>
    %13 = arith.addf %12, %11 : vector<2x1xf32>
    %14 = arith.divf %12, %13 : vector<2x1xf32>
    %c0_9 = arith.constant 0 : index
    %c0_10 = arith.constant 0 : index
    %15 = vector.load %arg4[%c0_9, %c0_10] : memref<2x1xf32, #tpu.memory_space<vmem>>, vector<2x1xf32>
    tpu.vector_store %arg4[%c0_9, %c0_10], %14 {strides = array<i32>} : memref<2x1xf32, #tpu.memory_space<vmem>>, vector<2x1xf32>,
    return
  }
  func.func @transform_0(%arg0: i32) -> (i32, i32, i32) {
    %c0_i32 = arith.constant 0 : i32
    %c0_i32_0 = arith.constant 0 : i32
    %c0_i32_1 = arith.constant 0 : i32
    %c0_i32_2 = arith.constant 0 : i32
    return %c0_i32, %c0_i32_0, %c0_i32_1 : i32, i32, i32
  }
  func.func @transform_1(%arg0: i32) -> (i32, i32, i32) {
    %c0_i32 = arith.constant 0 : i32
    %c0_i32_0 = arith.constant 0 : i32
    %c0_i32_1 = arith.constant 0 : i32
    %c0_i32_2 = arith.constant 0 : i32
    return %c0_i32, %c0_i32_0, %c0_i32_1 : i32, i32, i32
  }
  func.func @transform_2(%arg0: i32) -> (i32, i32) {
    %c0_i32 = arith.constant 0 : i32
    %c0_i32_0 = arith.constant 0 : i32
    %c0_i32_1 = arith.constant 0 : i32
    return %c0_i32, %c0_i32_0 : i32, i32
  }
  func.func @transform_3(%arg0: i32) -> (i32, i32) {
    %c0_i32 = arith.constant 0 : i32
    %c0_i32_0 = arith.constant 0 : i32
    %c0_i32_1 = arith.constant 0 : i32
    return %c0_i32, %c0_i32_0 : i32, i32
  }
}

</mosaic_0001>

<llo_original>
// kernel: tpu_custom_call.1
$region0: #{tpu_custom_call.1}
  #allocation0 [shape = 'u32[]', space=smem, size = 0x4, offset = 0x4, fixed_abs, tag = 'smem constant byte address 0x4 - core index']
  #allocation1 [shape = 'u32[144,128]{1,0:T(1,128)}', space=vmem, size = 0x12000, scoped, tag = 'internal scratch']
  #allocation2 [shape = 'f32[1,1]{1,0:T(1,128)S(6)}', space=smem, size = 0x200, scoped, tag = 'scoped memory for tpu_custom_call.1']
  %s0 = inlined_call_operand.hbm [shape: f32[2,48,128], index: 0, kind: input, shape index: {}]
  %s1 = inlined_call_operand.hbm [shape: f32[1,48,128], index: 1, kind: input, shape index: {}]
  %s2 = inlined_call_operand.<no memory space> [shape: f32[1,1], index: 2, kind: input, shape index: {}]
  %s3 = inlined_call_operand.vmem [shape: f32[2,1], index: 3, kind: output, shape index: {}]
  %s4 = sld [smem:[#allocation0]]
  $region30: #{tpu_custom_call.1} parent=0
    _
  %s6 = ssub.s32 1, %s4
  %s7 = scalar_select 0, %s6, %s4
  %8 = sst [smem:[#allocation2]] %s2
  $region1: #{tpu_custom_call.1} parent=0
    #allocation3 [shape = 'u8[49152]{0}', space=vmem, size = 0xc000, scoped, tag = 'input window, operand 0, single buffered']
    #allocation4 [shape = 's32[1]{0}', space=sflag, size = 0x4, scoped, tag = 'scoped memory for tpu_custom_call.1']
    #allocation5 [shape = 'u8[24576]{0}', space=vmem, size = 0x6000, scoped, tag = 'input window, operand 1, single buffered']
    #allocation6 [shape = 's32[1]{0}', space=sflag, size = 0x4, scoped, tag = 'scoped memory for tpu_custom_call.1']
    %9 = vsyncpa [#allocation4], 0
    %10 = vsyncpa [#allocation6], 0
    // Predicated region
    $region2: #{tpu_custom_call.1} parent=1 // pred_check
      _
    $region3: #{tpu_custom_call.1} parent=1 // pred_check_branch
      %12 = sbr.rel (0) target = $region5
    $region4: #{tpu_custom_call.1} parent=1 // pred_region
      %s14 = ssub.s32 1536, 1536
      %15 = vsyncadd [#allocation4], %s14
      %s16 = sshll.u32 [#allocation3], 4
      %s17 = int_to_ptr.vmem [resolvable:$true] %s16
      %22 = dma.hbm_to_vmem [thread:$0]  %s0, 1536, %s17, [#allocation4], 128, 128, 8
    $region5: #{tpu_custom_call.1} parent=1 // pred_fallthru
      _
    // Predicated region
    $region6: #{tpu_custom_call.1} parent=1 // pred_check
      _
    $region7: #{tpu_custom_call.1} parent=1 // pred_check_branch
      %24 = sbr.rel (0) target = $region9
    $region8: #{tpu_custom_call.1} parent=1 // pred_region
      %s26 = ssub.s32 768, 768
      %27 = vsyncadd [#allocation6], %s26
      %s28 = sshll.u32 [#allocation5], 4
      %s29 = int_to_ptr.vmem [resolvable:$true] %s28
      %34 = dma.hbm_to_vmem [thread:$0]  %s1, 768, %s29, [#allocation6], 128, 128, 8
    $region9: #{tpu_custom_call.1} parent=1 // pred_fallthru
      _
    // Predicated region
    $region10: #{tpu_custom_call.1} parent=1 // pred_check
      _
    $region11: #{tpu_custom_call.1} parent=1 // pred_check_branch
      %36 = sbr.rel (0) target = $region13
    $region12: #{tpu_custom_call.1} parent=1 // pred_region
      _
    $region13: #{tpu_custom_call.1} parent=1 // pred_fallthru
      _
    // Predicated region
    $region14: #{tpu_custom_call.1} parent=1 // pred_check
      _
    $region15: #{tpu_custom_call.1} parent=1 // pred_check_branch
      %38 = sbr.rel (0) target = $region17
    $region16: #{tpu_custom_call.1} parent=1 // pred_region
      %39 = dma.done [#allocation4], 1536
    $region17: #{tpu_custom_call.1} parent=1 // pred_fallthru
      _
    // Predicated region
    $region18: #{tpu_custom_call.1} parent=1 // pred_check
      _
    $region19: #{tpu_custom_call.1} parent=1 // pred_check_branch
      %41 = sbr.rel (0) target = $region21
    $region20: #{tpu_custom_call.1} parent=1 // pred_region
      %42 = dma.done [#allocation6], 768
    $region21: #{tpu_custom_call.1} parent=1 // pred_fallthru
      _
    %v43 = vld [vmem:[#allocation3] sm:$0xff]
    %v44 = vld [vmem:[#allocation3 + $0x8] sm:$0xff]
    %v45 = vld [vmem:[#allocation3 + $0x10] sm:$0xff]
    %v46 = vld [vmem:[#allocation3 + $0x18] sm:$0xff]
    %v47 = vld [vmem:[#allocation3 + $0x20] sm:$0xff]
    %v48 = vld [vmem:[#allocation3 + $0x28] sm:$0xff]
    %v49 = vld [vmem:[#allocation3 + $0x30] sm:$0xff]
    %v50 = vld [vmem:[#allocation3 + $0x38] sm:$0xff]
    %v51 = vld [vmem:[#allocation3 + $0x40] sm:$0xff]
    %v52 = vld [vmem:[#allocation3 + $0x48] sm:$0xff]
    %v53 = vld [vmem:[#allocation3 + $0x50] sm:$0xff]
    %v54 = vld [vmem:[#allocation3 + $0x58] sm:$0xff]
    %v55 = vld [vmem:[#allocation5] sm:$0xff]
    %v56 = vld [vmem:[#allocation5 + $0x8] sm:$0xff]
    %v57 = vld [vmem:[#allocation5 + $0x10] sm:$0xff]
    %v58 = vld [vmem:[#allocation5 + $0x18] sm:$0xff]
    %v59 = vld [vmem:[#allocation5 + $0x20] sm:$0xff]
    %v60 = vld [vmem:[#allocation5 + $0x28] sm:$0xff]
    %v61 = vmul.f32 %v43, %v55
    %v62 = vmul.f32 %v44, %v56
    %v63 = vmul.f32 %v45, %v57
    %v64 = vmul.f32 %v46, %v58
    %v65 = vmul.f32 %v47, %v59
    %v66 = vmul.f32 %v48, %v60
    %v67 = vmul.f32 %v49, %v55
    %v68 = vmul.f32 %v50, %v56
    %v69 = vmul.f32 %v51, %v57
    %v70 = vmul.f32 %v52, %v58
    %v71 = vmul.f32 %v53, %v59
    %v72 = vmul.f32 %v54, %v60
    %73 = vadd.xlane.f32.xlu0 %v61
    %v74 = vpop.xlane.xlu0 %73
    %75 = vadd.xlane.f32.xlu0 %v62
    %v76 = vpop.xlane.xlu0 %75
    %77 = vadd.xlane.f32.xlu0 %v63
    %v78 = vpop.xlane.xlu0 %77
    %79 = vadd.xlane.f32.xlu0 %v64
    %v80 = vpop.xlane.xlu0 %79
    %81 = vadd.xlane.f32.xlu0 %v65
    %v82 = vpop.xlane.xlu0 %81
    %83 = vadd.xlane.f32.xlu0 %v66
    %v84 = vpop.xlane.xlu0 %83
    %85 = vadd.xlane.f32.xlu0 %v67
    %v86 = vpop.xlane.xlu0 %85
    %87 = vadd.xlane.f32.xlu0 %v68
    %v88 = vpop.xlane.xlu0 %87
    %89 = vadd.xlane.f32.xlu0 %v69
    %v90 = vpop.xlane.xlu0 %89
    %91 = vadd.xlane.f32.xlu0 %v70
    %v92 = vpop.xlane.xlu0 %91
    %93 = vadd.xlane.f32.xlu0 %v71
    %v94 = vpop.xlane.xlu0 %93
    %95 = vadd.xlane.f32.xlu0 %v72
    %v96 = vpop.xlane.xlu0 %95
    %v109 = vlaneseq
    %v110 = vand.u32 %v109, 127
    %v111 = vlaneseq
    %v112 = vshrl.u32 %v111, 7
    %v113 = vsub.s32 %v110, %v112
    %v114 = vrot.slane %v74, %v113
    %v115 = vadd.s32 %v110, 4294967288
    %v116 = vlaneseq
    %v117 = vshrl.u32 %v116, 7
    %v118 = vsub.s32 %v115, %v117
    %v119 = vrot.slane %v76, %v118
    %vm120 = vcmask 130112
    %v121 = vsel %vm120, %v119, %v114
    %v122 = vadd.s32 %v110, 4294967280
    %v123 = vlaneseq
    %v124 = vshrl.u32 %v123, 7
    %v125 = vsub.s32 %v122, %v124
    %v126 = vrot.slane %v78, %v125
    %vm127 = vcmask 195712
    %v128 = vsel %vm127, %v126, %v121
    %v129 = vadd.s32 %v110, 4294967272
    %v130 = vlaneseq
    %v131 = vshrl.u32 %v130, 7
    %v132 = vsub.s32 %v129, %v131
    %v133 = vrot.slane %v80, %v132
    %vm134 = vcmask 261312
    %v135 = vsel %vm134, %v133, %v128
    %v136 = vadd.s32 %v110, 4294967264
    %v137 = vlaneseq
    %v138 = vshrl.u32 %v137, 7
    %v139 = vsub.s32 %v136, %v138
    %v140 = vrot.slane %v82, %v139
    %vm141 = vcmask 326912
    %v142 = vsel %vm141, %v140, %v135
    %v143 = vadd.s32 %v110, 4294967256
    %v144 = vlaneseq
    %v145 = vshrl.u32 %v144, 7
    %v146 = vsub.s32 %v143, %v145
    %v147 = vrot.slane %v84, %v146
    %vm148 = vcmask 392512
    %v149 = vsel %vm148, %v147, %v142
    %v150 = vlaneseq
    %v151 = vshrl.u32 %v150, 7
    %v152 = vsub.s32 %v110, %v151
    %v153 = vrot.slane %v86, %v152
    %v154 = vlaneseq
    %v155 = vshrl.u32 %v154, 7
    %v156 = vsub.s32 %v115, %v155
    %v157 = vrot.slane %v88, %v156
    %v158 = vsel %vm120, %v157, %v153
    %v159 = vlaneseq
    %v160 = vshrl.u32 %v159, 7
    %v161 = vsub.s32 %v122, %v160
    %v162 = vrot.slane %v90, %v161
    %v163 = vsel %vm127, %v162, %v158
    %v164 = vlaneseq
    %v165 = vshrl.u32 %v164, 7
    %v166 = vsub.s32 %v129, %v165
    %v167 = vrot.slane %v92, %v166
    %v168 = vsel %vm134, %v167, %v163
    %v169 = vlaneseq
    %v170 = vshrl.u32 %v169, 7
    %v171 = vsub.s32 %v136, %v170
    %v172 = vrot.slane %v94, %v171
    %v173 = vsel %vm141, %v172, %v168
    %v174 = vlaneseq
    %v175 = vshrl.u32 %v174, 7
    %v176 = vsub.s32 %v143, %v175
    %v177 = vrot.slane %v96, %v176
    %v178 = vsel %vm148, %v177, %v173
    %vm179 = vcmask 1041409
    %v180 = vsel %vm179, %v178, %v149
    %vm182 = vcmask 386048
    %v183 = vsel %vm182, %v180, 0.0
    %184 = vadd.xlane.f32.xlu0 %v183
    %v185 = vpop.xlane.xlu0 %184
    %s186 = sld [smem:[#allocation2]]
    %v187 = vstv %s186
    %v188 = vadd.f32 %v185, %v187
    %v189 = vxor.u32 %v188, 2147483648
    %v190 = vmul.f32 %v189, 1.442695
    %v191 = vpow.pop %v190
    %v192 = vadd.f32 %v191, 1.0
    %v193 = vrcp.pop %v192
    %v194 = vmul.f32 1.0, %v193
    %vm195 = vcmask 1024
    %196 = vst.msk [vmem:[%s3] sm:$0x3] %vm195, %v194
    // Predicated region
    $region22: #{tpu_custom_call.1} parent=1 // pred_check
      _
    $region23: #{tpu_custom_call.1} parent=1 // pred_check_branch
      %198 = sbr.rel (0) target = $region25
    $region24: #{tpu_custom_call.1} parent=1 // pred_region
      _
    $region25: #{tpu_custom_call.1} parent=1 // pred_fallthru
      _
    // Predicated region
    $region26: #{tpu_custom_call.1} parent=1 // pred_check
      _
    $region27: #{tpu_custom_call.1} parent=1 // pred_check_branch
      %200 = sbr.rel (0) target = $region29
    $region28: #{tpu_custom_call.1} parent=1 // pred_region
      _
    $region29: #{tpu_custom_call.1} parent=1 // pred_fallthru
      _
    %201 = vsyncpa [#allocation4], 1
    %202 = vsyncpa [#allocation6], 1

</llo_original>
